<compile_context>
chip_gen: v7x
topology: tpu7x:2x2x1
jax: 0.10.0
libtpu: 0.0.40
codegen_flags: <defaults>
</compile_context>

<pallas_src>
import functools

import jax
import jax.numpy as jnp
from jax.experimental import pallas as pl
from jax.experimental.pallas import tpu as pltpu

_ROW_ALIGN = 16  # bf16 sublane packing on the batch axis


def _round_up(x, m):
    return ((x + m - 1) // m) * m


def _cdiv(a, b):
    return -(-a // b)


def _teammate_kernel(x_ref, we_ref, be_ref, wh_ref, bh_ref, out_ref, *, split):
    # Fused embedding: one block-diagonal bf16 matmul (f32 acc) + bias + ReLU.
    emb = (jnp.dot(x_ref[...], we_ref[...], preferred_element_type=jnp.float32)
           + be_ref[...])
    emb = jnp.maximum(emb, 0.0).astype(jnp.bfloat16)

    # Fused heads: one (3H, n_out_pad) bf16 matmul (f32 acc) + bias.
    z = (jnp.dot(emb, wh_ref[...], preferred_element_type=jnp.float32)
         + bh_ref[...])

    # ReLU on columns [0, split), sigmoid on columns [split, end).
    # Padded columns (>= true n_out) land in the sigmoid branch and are
    # discarded in the wrapper.
    col = jax.lax.broadcasted_iota(jnp.int32, z.shape, dimension=1)
    out_ref[...] = jnp.where(col >= split, jax.nn.sigmoid(z),
                             jnp.maximum(z, 0.0))


def pack_params(p):
    """Pack per-layer weights into the fused layouts used by the kernel.

    W_emb = blockdiag(wo, wh, wa) in bf16, W_head = [wr | ws | wt] zero-padded
    to a lane-dense (multiple of 128) output width, bf16.  Biases stay f32
    (added post-matmul to the f32 accumulator).
    """
    d_o, hd = p["wo"].shape
    d_h = p["wh"].shape[0]
    d_a = p["wa"].shape[0]
    d_in = d_o + d_h + d_a
    state_shape = p["ws"].shape[1]
    n_out = 1 + state_shape + 2
    n_out_pad = _round_up(n_out, 128)

    # NOTE: block-diagonal packing triples the nominal FLOPs of the first
    # matmul; fine while d_in <= 128/256 (one MXU pass).  Switch to three
    # accumulating dots if hidden_dim scales up.
    w_emb = jnp.zeros((d_in, 3 * hd), jnp.float32)
    w_emb = w_emb.at[:d_o, :hd].set(p["wo"])
    w_emb = w_emb.at[d_o:d_o + d_h, hd:2 * hd].set(p["wh"])
    w_emb = w_emb.at[d_o + d_h:, 2 * hd:].set(p["wa"])
    b_emb = jnp.concatenate([p["bo"], p["bh"], p["ba"]], axis=-1)

    w_head = jnp.concatenate([p["wr"], p["ws"], p["wt"]], axis=-1)
    b_head = jnp.concatenate([p["br"], p["bs"], p["bt"]], axis=-1)
    w_head = jnp.pad(w_head, ((0, 0), (0, n_out_pad - n_out)))
    b_head = jnp.pad(b_head, ((0, 0), (0, n_out_pad - n_out)))

    return dict(w_emb=w_emb.astype(jnp.bfloat16),
                b_emb=b_emb.astype(jnp.float32),
                w_head=w_head.astype(jnp.bfloat16),
                b_head=b_head.astype(jnp.float32),
                state_shape=state_shape,
                n_out=n_out,
                n_out_pad=n_out_pad)


def _vmem_limit_bytes(tile, d_in, three_h, n_out_pad):
    need = (
        2 * tile * d_in * 2                                 # x (bf16), 2 bufs
        + 2 * tile * n_out_pad * 4                          # out (f32), 2 bufs
        + tile * three_h * 4                                # emb spill headroom
        + tile * n_out_pad * 4                              # z / mask headroom
        + 2 * (d_in * three_h + three_h * n_out_pad) * 2    # weights (bf16)
        + (2 << 20)                                         # biases + slack
    )
    # Floor at the common default; cap below v7x's 64 MiB physical VMEM.
    return int(min(max(need, 16 << 20), 48 << 20))


def teammate_forward(obs, hidden_state, actions, packed, *, b_tile=4096):
    """Fused forward pass of TeammateModel -> (reward, state_next, terminated)."""
    B = obs.shape[0]
    state_shape = packed["state_shape"]
    n_out = packed["n_out"]
    n_out_pad = packed["n_out_pad"]
    split = 1 + state_shape

    w_emb, b_emb = packed["w_emb"], packed["b_emb"]
    w_head, b_head = packed["w_head"], packed["b_head"]
    d_in = w_emb.shape[0]
    three_h = w_emb.shape[1]

    # Concatenate inputs wrapper-side and cast the activation stream to bf16
    # (halves HBM read traffic of the dominant DMA stream).
    x = jnp.concatenate([obs, hidden_state, actions], axis=-1).astype(jnp.bfloat16)

    # Tile sizing: derive from the actual batch (padding waste <= ROW_ALIGN-1
    # rows), require >=2 grid steps when the batch is big enough so both v7x
    # TensorCores get work, and never drop below ROW_ALIGN real rows per tile.
    num_tiles = _cdiv(B, b_tile)
    num_tiles = max(num_tiles, 2)
    num_tiles = max(1, min(num_tiles, _cdiv(B, _ROW_ALIGN)))
    tile = _round_up(_cdiv(B, num_tiles), _ROW_ALIGN)
    b_pad = tile * num_tiles
    if b_pad != B:
        x = jnp.pad(x, ((0, b_pad - B), (0, 0)))

    grid = (num_tiles,)
    kernel = functools.partial(_teammate_kernel, split=split)

    packed_out = pl.pallas_call(
        kernel,
        out_shape=jax.ShapeDtypeStruct((b_pad, n_out_pad), jnp.float32),
        grid_spec=pltpu.PrefetchScalarGridSpec(
            num_scalar_prefetch=0,
            grid=grid,
            in_specs=[
                pl.BlockSpec((tile, d_in), lambda i: (i, 0)),        # x (bf16)
                pl.BlockSpec((d_in, three_h), lambda i: (0, 0)),     # W_emb (resident)
                pl.BlockSpec((1, three_h), lambda i: (0, 0)),        # b_emb
                pl.BlockSpec((three_h, n_out_pad), lambda i: (0, 0)),  # W_head (resident)
                pl.BlockSpec((1, n_out_pad), lambda i: (0, 0)),      # b_head
            ],
            out_specs=pl.BlockSpec((tile, n_out_pad), lambda i: (i, 0)),
        ),
        compiler_params=pltpu.CompilerParams(
            dimension_semantics=("parallel",),
            vmem_limit_bytes=_vmem_limit_bytes(tile, d_in, three_h, n_out_pad)),
    )(x, w_emb, b_emb, w_head, b_head)

    packed_out = packed_out[:B]
    reward = packed_out[:, 0:1]
    state_next = packed_out[:, 1:1 + state_shape]
    terminated = packed_out[:, 1 + state_shape:1 + state_shape + 2]
    return reward, state_next, terminated


def init_params(key, obs_shape, hidden_state_dim, n_actions, hidden_dim,
                state_shape):
    """PyTorch-style Linear init: U(-1/sqrt(fan_in), +1/sqrt(fan_in)).

    Weights stored transposed as (in_features, out_features); biases (1, out).
    """
    def linear(k, fan_in, fan_out):
        kw, kb = jax.random.split(k)
        bound = 1.0 / jnp.sqrt(jnp.float32(fan_in))
        w = jax.random.uniform(kw, (fan_in, fan_out), jnp.float32, -bound, bound)
        b = jax.random.uniform(kb, (1, fan_out), jnp.float32, -bound, bound)
        return w, b

    keys = jax.random.split(key, 6)
    wo, bo = linear(keys[0], obs_shape, hidden_dim)
    wh, bh = linear(keys[1], hidden_state_dim, hidden_dim)
    wa, ba = linear(keys[2], n_actions, hidden_dim)
    wr, br = linear(keys[3], hidden_dim * 3, 1)
    ws, bs = linear(keys[4], hidden_dim * 3, state_shape)
    wt, bt = linear(keys[5], hidden_dim * 3, 2)
    return dict(wo=wo, bo=bo, wh=wh, bh=bh, wa=wa, ba=ba,
                wr=wr, br=br, ws=ws, bs=bs, wt=wt, bt=bt)


def reference_forward(obs, hidden_state, actions, p, operand_dtype=jnp.float32):
    """Pure-JAX reference matching the PyTorch forward semantics.

    `operand_dtype=jnp.bfloat16` reproduces the kernel's bf16-operand /
    f32-accumulation arithmetic for tight validation.
    """
    def mm(x, w):
        return jnp.dot(x.astype(operand_dtype), w.astype(operand_dtype),
                       preferred_element_type=jnp.float32)

    o = jax.nn.relu(mm(obs, p["wo"]) + p["bo"])
    h = jax.nn.relu(mm(hidden_state, p["wh"]) + p["bh"])
    a = jax.nn.relu(mm(actions, p["wa"]) + p["ba"])
    inps = jnp.concatenate([o, h, a], axis=-1)
    reward = jax.nn.relu(mm(inps, p["wr"]) + p["br"])
    state_next = jax.nn.relu(mm(inps, p["ws"]) + p["bs"])
    terminated = jax.nn.sigmoid(mm(inps, p["wt"]) + p["bt"])
    return reward, state_next, terminated


if __name__ == "__main__":
    # Small synthetic config (args.*).
    obs_shape = 16
    hidden_state_dim = 32
    n_actions = 8
    hidden_dim = 32
    state_shape = 16
    batch = 8

    key = jax.random.PRNGKey(0)
    k_obs, k_hid, k_act, k_par = jax.random.split(key, 4)

    obs = jax.random.normal(k_obs, (batch, obs_shape), jnp.float32)
    hidden_state = jax.random.normal(k_hid, (batch, hidden_state_dim), jnp.float32)
    actions = jax.random.normal(k_act, (batch, n_actions), jnp.float32)

    params = init_params(k_par, obs_shape, hidden_state_dim, n_actions,
                         hidden_dim, state_shape)
    packed = pack_params(params)

    reward, state_next, terminated = jax.block_until_ready(
        teammate_forward(obs, hidden_state, actions, packed))

    assert reward.shape == (batch, 1)
    assert state_next.shape == (batch, state_shape)
    assert terminated.shape == (batch, 2)

    # Tight check against a bf16-operand / f32-accumulation reference.
    r_bf, s_bf, t_bf = reference_forward(obs, hidden_state, actions, params,
                                         operand_dtype=jnp.bfloat16)
    assert jnp.allclose(reward, r_bf, atol=2e-3, rtol=2e-3)
    assert jnp.allclose(state_next, s_bf, atol=2e-3, rtol=2e-3)
    assert jnp.allclose(terminated, t_bf, atol=2e-3, rtol=2e-3)

    # Loose sanity check against the full-f32 reference (bf16 operand error).
    r_ref, s_ref, t_ref = reference_forward(obs, hidden_state, actions, params)
    assert jnp.allclose(reward, r_ref, atol=5e-2, rtol=5e-2)
    assert jnp.allclose(state_next, s_ref, atol=5e-2, rtol=5e-2)
    assert jnp.allclose(terminated, t_ref, atol=5e-2, rtol=5e-2)

    print("KERNEL_OK")
</pallas_src>

<mosaic_0001>
module attributes {stable_mosaic.version = 11 : i64} {
  func.func @_teammate_kernel(%arg0: i32, %arg1: memref<16x56xbf16, #tpu.memory_space<vmem>>, %arg2: memref<56x96xbf16, #tpu.memory_space<vmem>>, %arg3: memref<1x96xf32, #tpu.memory_space<vmem>>, %arg4: memref<96x128xbf16, #tpu.memory_space<vmem>>, %arg5: memref<1x128xf32, #tpu.memory_space<vmem>>, %arg6: memref<16x128xf32, #tpu.memory_space<vmem>>) attributes {dimension_semantics = [#tpu.dimension_semantics<parallel>], iteration_bounds = array<i64: 1>, scalar_prefetch = 0 : i64, scratch_operands = 0 : i64, tpu.core_type = #tpu.core_type<tc>, window_params = [{transform_indices = @transform_0, window_bounds = array<i64: 16, 56>}, {pipeline_mode = #tpu.pipeline_mode<synchronous>, transform_indices = @transform_1, window_bounds = array<i64: 56, 96>}, {pipeline_mode = #tpu.pipeline_mode<synchronous>, transform_indices = @transform_2, window_bounds = array<i64: 1, 96>}, {pipeline_mode = #tpu.pipeline_mode<synchronous>, transform_indices = @transform_3, window_bounds = array<i64: 96, 128>}, {pipeline_mode = #tpu.pipeline_mode<synchronous>, transform_indices = @transform_4, window_bounds = array<i64: 1, 128>}, {transform_indices = @transform_5, window_bounds = array<i64: 16, 128>}]} {
    %c0 = arith.constant 0 : index
    %c0_0 = arith.constant 0 : index
    %0 = vector.load %arg1[%c0, %c0_0] : memref<16x56xbf16, #tpu.memory_space<vmem>>, vector<16x56xbf16>
    %c0_1 = arith.constant 0 : index
    %c0_2 = arith.constant 0 : index
    %1 = vector.load %arg2[%c0_1, %c0_2] : memref<56x96xbf16, #tpu.memory_space<vmem>>, vector<56x96xbf16>
    %cst = arith.constant dense<0.000000e+00> : vector<16x96xf32>
    %2 = tpu.matmul %0, %1, %cst {dimension_numbers = #tpu.dot_dimension_numbers<[1], [0], [0], [1], [0, 0, 1, 1], [], []>} : vector<16x56xbf16>, vector<56x96xbf16>, vector<16x96xf32> -> vector<16x96xf32>
    %c0_3 = arith.constant 0 : index
    %c0_4 = arith.constant 0 : index
    %3 = vector.load %arg3[%c0_3, %c0_4] : memref<1x96xf32, #tpu.memory_space<vmem>>, vector<1x96xf32>
    %4 = vector.broadcast %3 : vector<1x96xf32> to vector<16x96xf32>
    %5 = arith.addf %2, %4 : vector<16x96xf32>
    %cst_5 = arith.constant 0.000000e+00 : f32
    %6 = vector.broadcast %cst_5 : f32 to vector<16x96xf32>
    %7 = arith.maximumf %5, %6 : vector<16x96xf32>
    %8 = arith.truncf %7 : vector<16x96xf32> to vector<16x96xbf16>
    %c0_6 = arith.constant 0 : index
    %c0_7 = arith.constant 0 : index
    %9 = vector.load %arg4[%c0_6, %c0_7] : memref<96x128xbf16, #tpu.memory_space<vmem>>, vector<96x128xbf16>
    %cst_8 = arith.constant dense<0.000000e+00> : vector<16x128xf32>
    %10 = tpu.matmul %8, %9, %cst_8 {dimension_numbers = #tpu.dot_dimension_numbers<[1], [0], [0], [1], [0, 0, 1, 1], [], []>} : vector<16x96xbf16>, vector<96x128xbf16>, vector<16x128xf32> -> vector<16x128xf32>
    %c0_9 = arith.constant 0 : index
    %c0_10 = arith.constant 0 : index
    %11 = vector.load %arg5[%c0_9, %c0_10] : memref<1x128xf32, #tpu.memory_space<vmem>>, vector<1x128xf32>
    %12 = vector.broadcast %11 : vector<1x128xf32> to vector<16x128xf32>
    %13 = arith.addf %10, %12 : vector<16x128xf32>
    %14 = tpu.iota {dimensions = array<i32: 1>} : vector<16x128xi32>
    %c17_i32 = arith.constant 17 : i32
    %15 = vector.broadcast %c17_i32 : i32 to vector<16x128xi32>
    %16 = arith.cmpi sge, %14, %15 : vector<16x128xi32>
    %17 = arith.negf %13 : vector<16x128xf32>
    %18 = math.exp %17 : vector<16x128xf32>
    %cst_11 = arith.constant 1.000000e+00 : f32
    %19 = vector.broadcast %cst_11 : f32 to vector<16x128xf32>
    %20 = arith.addf %19, %18 : vector<16x128xf32>
    %21 = arith.divf %19, %20 : vector<16x128xf32>
    %cst_12 = arith.constant 0.000000e+00 : f32
    %22 = vector.broadcast %cst_12 : f32 to vector<16x128xf32>
    %23 = arith.maximumf %13, %22 : vector<16x128xf32>
    %24 = arith.select %16, %21, %23 : vector<16x128xi1>, vector<16x128xf32>
    %c0_13 = arith.constant 0 : index
    %c0_14 = arith.constant 0 : index
    %25 = vector.load %arg6[%c0_13, %c0_14] : memref<16x128xf32, #tpu.memory_space<vmem>>, vector<16x128xf32>
    tpu.vector_store %arg6[%c0_13, %c0_14], %24 {strides = array<i32>} : memref<16x128xf32, #tpu.memory_space<vmem>>, vector<16x128xf32>,
    return
  }
  func.func @transform_0(%arg0: i32) -> (i32, i32) {
    %c0_i32 = arith.constant 0 : i32
    %c0_i32_0 = arith.constant 0 : i32
    return %arg0, %c0_i32 : i32, i32
  }
  func.func @transform_1(%arg0: i32) -> (i32, i32) {
    %c0_i32 = arith.constant 0 : i32
    %c0_i32_0 = arith.constant 0 : i32
    %c0_i32_1 = arith.constant 0 : i32
    return %c0_i32, %c0_i32_0 : i32, i32
  }
  func.func @transform_2(%arg0: i32) -> (i32, i32) {
    %c0_i32 = arith.constant 0 : i32
    %c0_i32_0 = arith.constant 0 : i32
    %c0_i32_1 = arith.constant 0 : i32
    return %c0_i32, %c0_i32_0 : i32, i32
  }
  func.func @transform_3(%arg0: i32) -> (i32, i32) {
    %c0_i32 = arith.constant 0 : i32
    %c0_i32_0 = arith.constant 0 : i32
    %c0_i32_1 = arith.constant 0 : i32
    return %c0_i32, %c0_i32_0 : i32, i32
  }
  func.func @transform_4(%arg0: i32) -> (i32, i32) {
    %c0_i32 = arith.constant 0 : i32
    %c0_i32_0 = arith.constant 0 : i32
    %c0_i32_1 = arith.constant 0 : i32
    return %c0_i32, %c0_i32_0 : i32, i32
  }
  func.func @transform_5(%arg0: i32) -> (i32, i32) {
    %c0_i32 = arith.constant 0 : i32
    %c0_i32_0 = arith.constant 0 : i32
    return %arg0, %c0_i32 : i32, i32
  }
}

</mosaic_0001>

<llo_original>
// kernel: tpu_custom_call.1
$region0: #{tpu_custom_call.1}
  #allocation0 [shape = 'u32[]', space=smem, size = 0x4, offset = 0x4, fixed_abs, tag = 'smem constant byte address 0x4 - core index']
  #allocation1 [shape = 'u32[144,128]{1,0:T(1,128)}', space=vmem, size = 0x12000, scoped, tag = 'internal scratch']
  %s0 = inlined_call_operand.hbm [shape: bf16[16,56], index: 0, kind: input, shape index: {}]
  %s1 = inlined_call_operand.hbm [shape: bf16[56,96], index: 1, kind: input, shape index: {}]
  %s2 = inlined_call_operand.vmem [shape: f32[1,96], index: 2, kind: input, shape index: {}]
  %s3 = inlined_call_operand.hbm [shape: bf16[96,128], index: 3, kind: input, shape index: {}]
  %s4 = inlined_call_operand.vmem [shape: f32[1,128], index: 4, kind: input, shape index: {}]
  %s5 = inlined_call_operand.hbm [shape: f32[16,128], index: 5, kind: output, shape index: {}]
  %s6 = sld [smem:[#allocation0]]
  $region42: #{tpu_custom_call.1} parent=0
    _
  %s8 = ssub.s32 1, %s6
  %s9 = scalar_select 0, %s8, %s6
  $region1: #{tpu_custom_call.1} parent=0
    #allocation2 [shape = 'u8[4096]{0}', space=vmem, size = 0x1000, scoped, tag = 'input window, operand 0, single buffered']
    #allocation3 [shape = 's32[1]{0}', space=sflag, size = 0x4, scoped, tag = 'scoped memory for tpu_custom_call.1']
    #allocation4 [shape = 's32[1]{0}', space=sflag, size = 0x4, scoped, tag = 'scoped memory for tpu_custom_call.1']
    #allocation5 [shape = 'u8[14336]{0}', space=vmem, size = 0x3800, scoped, tag = 'input window, operand 1, single buffered']
    #allocation6 [shape = 's32[1]{0}', space=sflag, size = 0x4, scoped, tag = 'scoped memory for tpu_custom_call.1']
    #allocation7 [shape = 'u8[24576]{0}', space=vmem, size = 0x6000, scoped, tag = 'input window, operand 3, single buffered']
    #allocation8 [shape = 'u8[8192]{0}', space=vmem, size = 0x2000, scoped, tag = 'output window, operand 0, single buffered']
    %10 = vsyncpa [#allocation3], 0
    %11 = vsyncpa [#allocation6], 0
    %12 = vsyncpa [#allocation4], 0
    // Predicated region
    $region2: #{tpu_custom_call.1} parent=1 // pred_check
      _
    $region3: #{tpu_custom_call.1} parent=1 // pred_check_branch
      %14 = sbr.rel (0) target = $region5
    $region4: #{tpu_custom_call.1} parent=1 // pred_region
      %s16 = ssub.s32 128, 128
      %17 = vsyncadd [#allocation3], %s16
      %s18 = sshll.u32 [#allocation2], 4
      %s19 = int_to_ptr.vmem [resolvable:$true] %s18
      %24 = dma.hbm_to_vmem [thread:$0]  %s0, 128, %s19, [#allocation3], 64, 64, 4
    $region5: #{tpu_custom_call.1} parent=1 // pred_fallthru
      _
    // Predicated region
    $region6: #{tpu_custom_call.1} parent=1 // pred_check
      _
    $region7: #{tpu_custom_call.1} parent=1 // pred_check_branch
      %26 = sbr.rel (0) target = $region9
    $region8: #{tpu_custom_call.1} parent=1 // pred_region
      %s28 = ssub.s32 448, 448
      %29 = vsyncadd [#allocation6], %s28
      %s30 = sshll.u32 [#allocation5], 4
      %s31 = int_to_ptr.vmem [resolvable:$true] %s30
      %36 = dma.hbm_to_vmem [thread:$0]  %s1, 448, %s31, [#allocation6], 64, 64, 4
    $region9: #{tpu_custom_call.1} parent=1 // pred_fallthru
      _
    // Predicated region
    $region10: #{tpu_custom_call.1} parent=1 // pred_check
      _
    $region11: #{tpu_custom_call.1} parent=1 // pred_check_branch
      %38 = sbr.rel (0) target = $region13
    $region12: #{tpu_custom_call.1} parent=1 // pred_region
      _
    $region13: #{tpu_custom_call.1} parent=1 // pred_fallthru
      _
    // Predicated region
    $region14: #{tpu_custom_call.1} parent=1 // pred_check
      _
    $region15: #{tpu_custom_call.1} parent=1 // pred_check_branch
      %40 = sbr.rel (0) target = $region17
    $region16: #{tpu_custom_call.1} parent=1 // pred_region
      %s42 = ssub.s32 768, 768
      %43 = vsyncadd [#allocation6], %s42
      %s44 = sshll.u32 [#allocation7], 4
      %s45 = int_to_ptr.vmem [resolvable:$true] %s44
      %50 = dma.hbm_to_vmem [thread:$0]  %s3, 768, %s45, [#allocation6], 64, 64, 4
    $region17: #{tpu_custom_call.1} parent=1 // pred_fallthru
      _
    // Predicated region
    $region18: #{tpu_custom_call.1} parent=1 // pred_check
      _
    $region19: #{tpu_custom_call.1} parent=1 // pred_check_branch
      %52 = sbr.rel (0) target = $region21
    $region20: #{tpu_custom_call.1} parent=1 // pred_region
      _
    $region21: #{tpu_custom_call.1} parent=1 // pred_fallthru
      _
    // Predicated region
    $region22: #{tpu_custom_call.1} parent=1 // pred_check
      _
    $region23: #{tpu_custom_call.1} parent=1 // pred_check_branch
      %54 = sbr.rel (0) target = $region25
    $region24: #{tpu_custom_call.1} parent=1 // pred_region
      %55 = dma.done [#allocation3], 128
    $region25: #{tpu_custom_call.1} parent=1 // pred_fallthru
      _
    // Predicated region
    $region26: #{tpu_custom_call.1} parent=1 // pred_check
      _
    $region27: #{tpu_custom_call.1} parent=1 // pred_check_branch
      %57 = sbr.rel (0) target = $region29
    $region28: #{tpu_custom_call.1} parent=1 // pred_region
      %58 = dma.done [#allocation6], 448
    $region29: #{tpu_custom_call.1} parent=1 // pred_fallthru
      _
    // Predicated region
    $region30: #{tpu_custom_call.1} parent=1 // pred_check
      _
    $region31: #{tpu_custom_call.1} parent=1 // pred_check_branch
      %60 = sbr.rel (0) target = $region33
    $region32: #{tpu_custom_call.1} parent=1 // pred_region
      %61 = dma.done [#allocation6], 768
    $region33: #{tpu_custom_call.1} parent=1 // pred_fallthru
      _
    %v63 = vld [vmem:[#allocation2] sm:$0xf]
    %v64 = vld [vmem:[#allocation2 + $0x4] sm:$0xf]
    %v65 = vld [vmem:[#allocation5] sm:$0xf]
    %v66 = vld [vmem:[#allocation5 + $0x4] sm:$0xf]
    %v67 = vld [vmem:[#allocation5 + $0x8] sm:$0xf]
    %v68 = vld [vmem:[#allocation5 + $0xc] sm:$0xf]
    %v69 = vld [vmem:[#allocation5 + $0x10] sm:$0xf]
    %v70 = vld [vmem:[#allocation5 + $0x14] sm:$0xf]
    %v71 = vld [vmem:[#allocation5 + $0x18] sm:$0xf]
    %v72 = vld [vmem:[%s2] sm:$0x1]
    %v74 = vlaneseq
    %v75 = vshrl.u32 %v74, 7
    %v76 = vsub.s32 0, %v75
    %v77 = vrot.slane %v72, %v76
    %v81 = vunpack.c.l.b16 %v63
    %v82 = vunpack.c.l.b16 %v64
    %v83 = vpack.c.b16 %v82, %v81
    %v91 = vunpack.c.l.b16 %v65
    %v92 = vunpack.c.l.b16 %v66
    %v93 = vunpack.c.l.b16 %v67
    %v94 = vunpack.c.l.b16 %v68
    %v95 = vunpack.c.l.b16 %v69
    %v96 = vunpack.c.l.b16 %v70
    %v97 = vunpack.c.l.b16 %v71
    %v98 = vpack.c.b16 %v92, %v91
    %v99 = vpack.c.b16 %v94, %v93
    %v100 = vpack.c.b16 %v96, %v95
    %v101 = vpack.c.b16 %v97, %v97
    %vm105 = vcmask 457728
    %v107 = vsel %vm105, %v83, 0
    %vm109 = vcmask 1043456
    %v111 = vsel %vm109, %v101, 0
    %113 = vmatprep.subr.bf16.mxu0 0
    %114 = vmatpush1.bf16.msra.mxu0 %v98
    %115 = vmatprep.subr.bf16.mxu0 0
    %116 = vmatpush1.bf16.msra.mxu0 %v99
    %117 = vmatprep.subr.bf16.mxu0 0
    %118 = vmatpush1.bf16.msra.mxu0 %v100
    %119 = vmatprep.subr.bf16.mxu0 0
    %120 = vmatpush1.bf16.msra.mxu0 %v111
    %121 = vmatprep.subr.bf16.mxu0 0
    %122 = vmatpush1.bf16.msra.mxu0 0
    %123 = vmatprep.subr.bf16.mxu0 0
    %124 = vmatpush1.bf16.msra.mxu0 0
    %125 = vmatprep.subr.bf16.mxu0 0
    %126 = vmatpush1.bf16.msra.mxu0 0
    %127 = vmatprep.subr.bf16.mxu0 0
    %128 = vmatpush1.bf16.msra.mxu0 0
    %129 = vmatprep.subr.bf16.mxu0 0
    %130 = vmatpush1.bf16.msra.mxu0 0
    %131 = vmatprep.subr.bf16.mxu0 0
    %132 = vmatpush1.bf16.msra.mxu0 0
    %133 = vmatprep.subr.bf16.mxu0 0
    %134 = vmatpush1.bf16.msra.mxu0 0
    %135 = vmatprep.subr.bf16.mxu0 0
    %136 = vmatpush1.bf16.msra.mxu0 0
    %137 = vmatprep.subr.bf16.mxu0 0
    %138 = vmatpush1.bf16.msra.mxu0 0
    %139 = vmatprep.subr.bf16.mxu0 0
    %140 = vmatpush1.bf16.msra.mxu0 0
    %141 = vmatprep.subr.bf16.mxu0 0
    %142 = vmatpush1.bf16.msra.mxu0 0
    %143 = vmatprep.subr.bf16.mxu0 0
    %144 = vmatpush1.bf16.msra.mxu0 0
    %145 = vmatprep.mubr.bf16.mxu0 0
    %146 = vmatmul.mubr.bf16.gmra.mrb[0].mxu0 %v107
    %v147 = vpop.f32.mrb[0].mxu0
    %v148 = vadd.f32 %v77, %v147
    %v149 = vpop.f32.mrb[0].mxu0
    %v150 = vpop.f32.mrb[0].mxu0
    %v151 = vadd.f32 %v77, %v150
    %v152 = vpop.f32.mrb[0].mxu0
    %153 = vdwg.mxu0
    %v154 = vmax.f32 %v148, 0.0
    %v155 = vmax.f32 %v151, 0.0
    %v156 = vpack.c.bf16 %v155, %v154
    %v157 = vld [vmem:[#allocation7] sm:$0xf]
    %v158 = vld [vmem:[#allocation7 + $0x4] sm:$0xf]
    %v159 = vld [vmem:[#allocation7 + $0x8] sm:$0xf]
    %v160 = vld [vmem:[#allocation7 + $0xc] sm:$0xf]
    %v161 = vld [vmem:[#allocation7 + $0x10] sm:$0xf]
    %v162 = vld [vmem:[#allocation7 + $0x14] sm:$0xf]
    %v163 = vld [vmem:[#allocation7 + $0x18] sm:$0xf]
    %v164 = vld [vmem:[#allocation7 + $0x1c] sm:$0xf]
    %v165 = vld [vmem:[#allocation7 + $0x20] sm:$0xf]
    %v166 = vld [vmem:[#allocation7 + $0x24] sm:$0xf]
    %v167 = vld [vmem:[#allocation7 + $0x28] sm:$0xf]
    %v168 = vld [vmem:[#allocation7 + $0x2c] sm:$0xf]
    %v169 = vld [vmem:[%s4] sm:$0x1]
    %v171 = vlaneseq
    %v172 = vshrl.u32 %v171, 7
    %v173 = vsub.s32 0, %v172
    %v174 = vrot.slane %v169, %v173
    %v188 = vunpack.c.l.b16 %v157
    %v189 = vunpack.c.l.b16 %v158
    %v190 = vunpack.c.l.b16 %v159
    %v191 = vunpack.c.l.b16 %v160
    %v192 = vunpack.c.l.b16 %v161
    %v193 = vunpack.c.l.b16 %v162
    %v194 = vunpack.c.l.b16 %v163
    %v195 = vunpack.c.l.b16 %v164
    %v196 = vunpack.c.l.b16 %v165
    %v197 = vunpack.c.l.b16 %v166
    %v198 = vunpack.c.l.b16 %v167
    %v199 = vunpack.c.l.b16 %v168
    %v200 = vpack.c.b16 %v189, %v188
    %v201 = vpack.c.b16 %v191, %v190
    %v202 = vpack.c.b16 %v193, %v192
    %v203 = vpack.c.b16 %v195, %v194
    %v204 = vpack.c.b16 %v197, %v196
    %v205 = vpack.c.b16 %v199, %v198
    %vm212 = vcmask 785408
    %v214 = vsel %vm212, %v156, 0
    %216 = vmatprep.subr.bf16.mxu0 0
    %217 = vmatpush1.bf16.msra.mxu0 %v200
    %218 = vmatprep.subr.bf16.mxu0 0
    %219 = vmatpush1.bf16.msra.mxu0 %v201
    %220 = vmatprep.subr.bf16.mxu0 0
    %221 = vmatpush1.bf16.msra.mxu0 %v202
    %222 = vmatprep.subr.bf16.mxu0 0
    %223 = vmatpush1.bf16.msra.mxu0 %v203
    %224 = vmatprep.subr.bf16.mxu0 0
    %225 = vmatpush1.bf16.msra.mxu0 %v204
    %226 = vmatprep.subr.bf16.mxu0 0
    %227 = vmatpush1.bf16.msra.mxu0 %v205
    %228 = vmatprep.subr.bf16.mxu0 0
    %229 = vmatpush1.bf16.msra.mxu0 0
    %230 = vmatprep.subr.bf16.mxu0 0
    %231 = vmatpush1.bf16.msra.mxu0 0
    %232 = vmatprep.subr.bf16.mxu0 0
    %233 = vmatpush1.bf16.msra.mxu0 0
    %234 = vmatprep.subr.bf16.mxu0 0
    %235 = vmatpush1.bf16.msra.mxu0 0
    %236 = vmatprep.subr.bf16.mxu0 0
    %237 = vmatpush1.bf16.msra.mxu0 0
    %238 = vmatprep.subr.bf16.mxu0 0
    %239 = vmatpush1.bf16.msra.mxu0 0
    %240 = vmatprep.subr.bf16.mxu0 0
    %241 = vmatpush1.bf16.msra.mxu0 0
    %242 = vmatprep.subr.bf16.mxu0 0
    %243 = vmatpush1.bf16.msra.mxu0 0
    %244 = vmatprep.subr.bf16.mxu0 0
    %245 = vmatpush1.bf16.msra.mxu0 0
    %246 = vmatprep.subr.bf16.mxu0 0
    %247 = vmatpush1.bf16.msra.mxu0 0
    %248 = vmatprep.mubr.bf16.mxu0 0
    %249 = vmatmul.mubr.bf16.gmra.mrb[0].mxu0 %v214
    %v250 = vpop.f32.mrb[0].mxu0
    %v251 = vadd.f32 %v174, %v250
    %v252 = vpop.f32.mrb[0].mxu0
    %v253 = vpop.f32.mrb[0].mxu0
    %v254 = vadd.f32 %v174, %v253
    %v255 = vpop.f32.mrb[0].mxu0
    %256 = vdwg.mxu0
    %v257 = vlaneseq
    %v258 = vand.u32 %v257, 127
    %vm259 = vcmp.ge.s32.totalorder %v258, 17
    %v260 = vxor.u32 %v251, 2147483648
    %v261 = vxor.u32 %v254, 2147483648
    %v262 = vmul.f32 %v260, 1.442695
    %v263 = vpow.pop %v262
    %v264 = vmul.f32 %v261, 1.442695
    %v265 = vpow.pop %v264
    %v266 = vadd.f32 %v263, 1.0
    %v267 = vadd.f32 %v265, 1.0
    %v268 = vrcp.pop %v266
    %v269 = vmul.f32 1.0, %v268
    %v270 = vrcp.pop %v267
    %v271 = vmul.f32 1.0, %v270
    %v272 = vmax.f32 %v251, 0.0
    %v273 = vmax.f32 %v254, 0.0
    %v274 = vsel %vm259, %v269, %v272
    %v275 = vsel %vm259, %v271, %v273
    %276 = vst [vmem:[#allocation8] sm:$0xff] %v274
    %277 = vst [vmem:[#allocation8 + $0x8] sm:$0xff] %v275
    // Predicated region
    $region34: #{tpu_custom_call.1} parent=1 // pred_check
      _
    $region35: #{tpu_custom_call.1} parent=1 // pred_check_branch
      %279 = sbr.rel (0) target = $region37
    $region36: #{tpu_custom_call.1} parent=1 // pred_region
      %s281 = ssub.s32 256, 256
      %282 = vsyncadd [#allocation4], %s281
      %s283 = sshll.u32 [#allocation8], 4
      %s284 = int_to_ptr.vmem [resolvable:$true] %s283
      %289 = dma.vmem_to_hbm [thread:$0]  %s284, 256, %s5, [#allocation4], 128, 128, 8
    $region37: #{tpu_custom_call.1} parent=1 // pred_fallthru
      _
    // Predicated region
    $region38: #{tpu_custom_call.1} parent=1 // pred_check
      _
    $region39: #{tpu_custom_call.1} parent=1 // pred_check_branch
      %291 = sbr.rel (0) target = $region41
    $region40: #{tpu_custom_call.1} parent=1 // pred_region
      %292 = dma.done [#allocation4], 256
    $region41: #{tpu_custom_call.1} parent=1 // pred_fallthru
      _
    %293 = vsyncpa [#allocation3], 1
    %294 = vsyncpa [#allocation6], 1
    %295 = vsyncpa [#allocation4], 1

</llo_original>
